<compile_context>
chip_gen: v7x
topology: tpu7x:2x2x1
jax: 0.10.0
libtpu: 0.0.40
codegen_flags: <defaults>
</compile_context>

<pallas_src>
import functools

import jax
import jax.numpy as jnp
from jax.experimental import pallas as pl
from jax.experimental.pallas import tpu as pltpu


def _round_up(x, m):
    return (x + m - 1) // m * m


def _tpu_vmem_capacity_bytes():
    try:
        return int(pltpu.get_tpu_info().vmem_capacity_bytes)
    except Exception:
        return 128 * 2**20  # conservative v5e/v6e-like fallback


def _conv3d_folded_kernel(xm_ref, xh_ref, w_ref, o_ref, *, groups, tq):
    # xm_ref : (1, Cin, tq)              main flat-input tile
    # xh_ref : (1, Cin, halo_pad)        narrow halo tile (next halo_pad columns)
    # w_ref  : (n_groups, Cout, gsz*Cin) folded weights, resident across the grid
    # o_ref  : (1, Cout, tq)             lane-dense output tile (tq % 128 == 0)
    xm = xm_ref[0]
    xh = xh_ref[0]
    # Both widths are multiples of 128 -> lane-aligned seam, whole-vreg moves.
    xc = jnp.concatenate([xm, xh], axis=-1)            # (Cin, tq + halo_pad)

    acc = None
    for gi, shifts in enumerate(groups):               # few (often 1) unrolled groups
        # im2col-in-VMEM slab for this tap group: (gsz*Cin, tq).  Cin is padded to
        # the sublane granule in the wrapper, so every piece is natively aligned.
        slab = jnp.concatenate([xc[:, sh:sh + tq] for sh in shifts], axis=0)
        part = jnp.dot(w_ref[gi], slab, preferred_element_type=jnp.float32)
        acc = part if acc is None else acc + part
    o_ref[0] = acc.astype(o_ref.dtype)


def basic_conv3d(x_ncdhw, weight_oidhw, *, tq_cap=None, mxu_dtype=None):
    """BasicConv3d.forward: Conv3d(kernel=3, stride=1, padding=1, bias=False).

    x_ncdhw      : [n, c_in, s, h, w]
    weight_oidhw : [c_out, c_in, 3, 3, 3]   (PyTorch layout)
    returns      : [n, c_out, s, h, w]      (dtype of x_ncdhw)
    """
    n, cin, s, h, w = x_ncdhw.shape
    cout, cin_w, kd, kh, kw = weight_oidhw.shape
    assert cin == cin_w and (kd, kh, kw) == (3, 3, 3)
    out_dtype = x_ncdhw.dtype

    comp_dtype = jnp.dtype(mxu_dtype) if mxu_dtype is not None else jnp.dtype(x_ncdhw.dtype)
    itemsize = comp_dtype.itemsize
    # Align channels to the sublane granule so slab pieces land on native offsets.
    cin_pad = _round_up(cin, 16 if itemsize == 2 else 8)

    wp = w + 2
    g = (h + 2) * wp                      # one padded 2-D frame, flattened
    off_max = 2 * g + 2 * wp + 2          # largest tap shift (~2 padded frames)
    halo_pad = _round_up(off_max, 128)    # narrow halo block width
    n_valid = s * g                       # flat positions holding real outputs

    # --- generation-aware tile sizing --------------------------------------
    vmem_cap = _tpu_vmem_capacity_bytes()
    small_vmem = vmem_cap <= 96 * 2**20   # v7x: 64 MiB per TensorCore
    if tq_cap is None:
        tq_cap = 2048 if small_vmem else 4096
    tq_cap = max(tq_cap, halo_pad)        # halo index map requires tq % halo_pad == 0

    tq = min(tq_cap, _round_up(n_valid, 128))
    if tq > 128 and pl.cdiv(n_valid, tq) < 2:
        # Prefer >=2 q-tiles so megacore (v7x) / pipelining has work to split.
        tq = max(128, _round_up(pl.cdiv(n_valid, 2), 128))
    tq = max(halo_pad, _round_up(tq, halo_pad))
    nq = pl.cdiv(n_valid, tq)

    # --- operand preparation: ONE pad (channels + spatial + flat tail) -----
    l_needed = nq * tq + halo_pad                    # halo of the last tile must exist
    base_len = (s + 2) * g
    d_extra = pl.cdiv(max(0, l_needed - base_len), g)
    x_c = x_ncdhw.astype(comp_dtype)
    xp = jnp.pad(x_c, ((0, 0), (0, cin_pad - cin),
                       (1, 1 + d_extra), (1, 1), (1, 1)))
    x_flat = xp.reshape(n, cin_pad, (s + 2 + d_extra) * g)   # contiguous -> no copy

    # --- taps -> contraction dimension (grouped fold) -----------------------
    shifts = tuple(a * g + b * wp + c
                   for a in range(3) for b in range(3) for c in range(3))
    slab_budget = (4 if small_vmem else 8) * 2**20
    gsz = 1
    for cand in (27, 9, 3):
        if cand * cin_pad * tq * itemsize <= slab_budget:
            gsz = cand
            break
    n_groups = 27 // gsz
    groups = tuple(shifts[i * gsz:(i + 1) * gsz] for i in range(n_groups))

    # Folded weights: (n_groups, cout, gsz*cin_pad), contraction axis lane-dense.
    w_c = jnp.pad(weight_oidhw.astype(comp_dtype),
                  ((0, 0), (0, cin_pad - cin), (0, 0), (0, 0), (0, 0)))
    w_taps = jnp.transpose(w_c, (2, 3, 4, 0, 1)).reshape(27, cout, cin_pad)
    w_folded = (w_taps.reshape(n_groups, gsz, cout, cin_pad)
                      .transpose(0, 2, 1, 3)
                      .reshape(n_groups, cout, gsz * cin_pad))

    kernel = functools.partial(_conv3d_folded_kernel, groups=groups, tq=tq)

    # --- VMEM plan (actual buffers, incl. slab) ------------------------------
    out_isz = jnp.dtype(out_dtype).itemsize
    per_step = (2 * cin_pad * tq * itemsize               # main input, double-buffered
                + 2 * cin_pad * halo_pad * itemsize       # halo input, double-buffered
                + 2 * cout * tq * out_isz                 # output, double-buffered
                + cin_pad * (tq + halo_pad) * itemsize    # concatenated xc
                + gsz * cin_pad * tq * itemsize           # im2col slab (one group live)
                + cout * tq * 4                           # f32 accumulator
                + n_groups * cout * gsz * cin_pad * itemsize)  # resident weights
    vmem_ceiling = (40 if small_vmem else 64) * 2**20
    vmem_limit = int(min(vmem_ceiling,
                         max(16 * 2**20, int(1.5 * per_step) + (2 << 20))))

    ratio = tq // halo_pad   # exact: tq is a multiple of halo_pad
    out_flat = pl.pallas_call(
        kernel,
        out_shape=jax.ShapeDtypeStruct((n, cout, nq * tq), out_dtype),
        grid_spec=pltpu.PrefetchScalarGridSpec(
            num_scalar_prefetch=0,
            grid=(n, nq),
            in_specs=[
                pl.BlockSpec((1, cin_pad, tq),
                             lambda i, q: (i, 0, q)),                    # main tile
                pl.BlockSpec((1, cin_pad, halo_pad),
                             lambda i, q: (i, 0, (q + 1) * ratio)),      # narrow halo
                pl.BlockSpec((n_groups, cout, gsz * cin_pad),
                             lambda i, q: (0, 0, 0)),                    # weights
            ],
            out_specs=pl.BlockSpec((1, cout, tq), lambda i, q: (i, 0, q)),
        ),
        compiler_params=pltpu.CompilerParams(
            dimension_semantics=("parallel", "parallel"),
            vmem_limit_bytes=vmem_limit),
    )(x_flat, x_flat, w_folded)

    # Valid outputs live at flat index d*g + i*(w+2) + j with i < h, j < w.
    out = out_flat[:, :, :n_valid].reshape(n, cout, s, h + 2, w + 2)
    return out[:, :, :, :h, :w]


if __name__ == "__main__":
    key = jax.random.PRNGKey(0)
    kx, kw_ = jax.random.split(key)

    # [n, c, s, h, w] as in BasicConv3d.forward
    n, cin, cout, s, h, w = 2, 4, 8, 4, 8, 8
    x = jax.random.normal(kx, (n, cin, s, h, w), dtype=jnp.float32)
    # PyTorch Conv3d weight layout [out_c, in_c, kD, kH, kW]
    weight = jax.random.normal(kw_, (cout, cin, 3, 3, 3), dtype=jnp.float32) * 0.1

    # Reference semantics (XLA conv == PyTorch Conv3d cross-correlation).
    ref = jax.lax.conv_general_dilated(
        x, weight, window_strides=(1, 1, 1),
        padding=((1, 1), (1, 1), (1, 1)),
        dimension_numbers=("NCDHW", "OIDHW", "NCDHW"))

    # f32 MXU-operand path (tight check).
    out = jax.block_until_ready(basic_conv3d(x, weight))
    assert out.shape == (n, cout, s, h, w), out.shape
    assert jnp.allclose(out, ref, atol=1e-4, rtol=1e-4), \
        float(jnp.max(jnp.abs(out - ref)))

    # bf16 MXU-operand path (recommended default on v6e/v7x; f32 accumulation).
    out_bf16 = jax.block_until_ready(basic_conv3d(x, weight, mxu_dtype=jnp.bfloat16))
    assert out_bf16.shape == (n, cout, s, h, w), out_bf16.shape
    assert jnp.allclose(out_bf16, ref, atol=5e-2, rtol=5e-2), \
        float(jnp.max(jnp.abs(out_bf16 - ref)))

    print("KERNEL_OK")
</pallas_src>

<mosaic_0001>
module attributes {stable_mosaic.version = 11 : i64} {
  func.func @_conv3d_folded_kernel(%arg0: i32, %arg1: i32, %arg2: memref<1x8x256xf32, #tpu.memory_space<vmem>>, %arg3: memref<1x8x256xf32, #tpu.memory_space<vmem>>, %arg4: memref<1x8x216xf32, #tpu.memory_space<vmem>>, %arg5: memref<1x8x256xf32, #tpu.memory_space<vmem>>) attributes {dimension_semantics = [#tpu.dimension_semantics<parallel>, #tpu.dimension_semantics<parallel>], iteration_bounds = array<i64: 2, 2>, scalar_prefetch = 0 : i64, scratch_operands = 0 : i64, tpu.core_type = #tpu.core_type<tc>, window_params = [{transform_indices = @transform_0, window_bounds = array<i64: 1, 8, 256>}, {transform_indices = @transform_1, window_bounds = array<i64: 1, 8, 256>}, {pipeline_mode = #tpu.pipeline_mode<synchronous>, transform_indices = @transform_2, window_bounds = array<i64: 1, 8, 216>}, {transform_indices = @transform_3, window_bounds = array<i64: 1, 8, 256>}]} {
    %c0 = arith.constant 0 : index
    %c0_0 = arith.constant 0 : index
    %c0_1 = arith.constant 0 : index
    %0 = vector.load %arg2[%c0, %c0_0, %c0_1] : memref<1x8x256xf32, #tpu.memory_space<vmem>>, vector<1x8x256xf32>
    %1 = vector.shape_cast %0 : vector<1x8x256xf32> to vector<8x256xf32>
    %c0_2 = arith.constant 0 : index
    %c0_3 = arith.constant 0 : index
    %c0_4 = arith.constant 0 : index
    %2 = vector.load %arg3[%c0_2, %c0_3, %c0_4] : memref<1x8x256xf32, #tpu.memory_space<vmem>>, vector<1x8x256xf32>
    %3 = vector.shape_cast %2 : vector<1x8x256xf32> to vector<8x256xf32>
    %4 = tpu.concatenate %1, %3 in 1 : vector<8x256xf32>, vector<8x256xf32> -> vector<8x512xf32>
    %5 = vector.extract_strided_slice %4 {offsets = [0, 0], sizes = [8, 256], strides = [1, 1]} : vector<8x512xf32> to vector<8x256xf32>
    %6 = vector.extract_strided_slice %4 {offsets = [0, 1], sizes = [8, 256], strides = [1, 1]} : vector<8x512xf32> to vector<8x256xf32>
    %7 = vector.extract_strided_slice %4 {offsets = [0, 2], sizes = [8, 256], strides = [1, 1]} : vector<8x512xf32> to vector<8x256xf32>
    %8 = vector.extract_strided_slice %4 {offsets = [0, 10], sizes = [8, 256], strides = [1, 1]} : vector<8x512xf32> to vector<8x256xf32>
    %9 = vector.extract_strided_slice %4 {offsets = [0, 11], sizes = [8, 256], strides = [1, 1]} : vector<8x512xf32> to vector<8x256xf32>
    %10 = vector.extract_strided_slice %4 {offsets = [0, 12], sizes = [8, 256], strides = [1, 1]} : vector<8x512xf32> to vector<8x256xf32>
    %11 = vector.extract_strided_slice %4 {offsets = [0, 20], sizes = [8, 256], strides = [1, 1]} : vector<8x512xf32> to vector<8x256xf32>
    %12 = vector.extract_strided_slice %4 {offsets = [0, 21], sizes = [8, 256], strides = [1, 1]} : vector<8x512xf32> to vector<8x256xf32>
    %13 = vector.extract_strided_slice %4 {offsets = [0, 22], sizes = [8, 256], strides = [1, 1]} : vector<8x512xf32> to vector<8x256xf32>
    %14 = vector.extract_strided_slice %4 {offsets = [0, 100], sizes = [8, 256], strides = [1, 1]} : vector<8x512xf32> to vector<8x256xf32>
    %15 = vector.extract_strided_slice %4 {offsets = [0, 101], sizes = [8, 256], strides = [1, 1]} : vector<8x512xf32> to vector<8x256xf32>
    %16 = vector.extract_strided_slice %4 {offsets = [0, 102], sizes = [8, 256], strides = [1, 1]} : vector<8x512xf32> to vector<8x256xf32>
    %17 = vector.extract_strided_slice %4 {offsets = [0, 110], sizes = [8, 256], strides = [1, 1]} : vector<8x512xf32> to vector<8x256xf32>
    %18 = vector.extract_strided_slice %4 {offsets = [0, 111], sizes = [8, 256], strides = [1, 1]} : vector<8x512xf32> to vector<8x256xf32>
    %19 = vector.extract_strided_slice %4 {offsets = [0, 112], sizes = [8, 256], strides = [1, 1]} : vector<8x512xf32> to vector<8x256xf32>
    %20 = vector.extract_strided_slice %4 {offsets = [0, 120], sizes = [8, 256], strides = [1, 1]} : vector<8x512xf32> to vector<8x256xf32>
    %21 = vector.extract_strided_slice %4 {offsets = [0, 121], sizes = [8, 256], strides = [1, 1]} : vector<8x512xf32> to vector<8x256xf32>
    %22 = vector.extract_strided_slice %4 {offsets = [0, 122], sizes = [8, 256], strides = [1, 1]} : vector<8x512xf32> to vector<8x256xf32>
    %23 = vector.extract_strided_slice %4 {offsets = [0, 200], sizes = [8, 256], strides = [1, 1]} : vector<8x512xf32> to vector<8x256xf32>
    %24 = vector.extract_strided_slice %4 {offsets = [0, 201], sizes = [8, 256], strides = [1, 1]} : vector<8x512xf32> to vector<8x256xf32>
    %25 = vector.extract_strided_slice %4 {offsets = [0, 202], sizes = [8, 256], strides = [1, 1]} : vector<8x512xf32> to vector<8x256xf32>
    %26 = vector.extract_strided_slice %4 {offsets = [0, 210], sizes = [8, 256], strides = [1, 1]} : vector<8x512xf32> to vector<8x256xf32>
    %27 = vector.extract_strided_slice %4 {offsets = [0, 211], sizes = [8, 256], strides = [1, 1]} : vector<8x512xf32> to vector<8x256xf32>
    %28 = vector.extract_strided_slice %4 {offsets = [0, 212], sizes = [8, 256], strides = [1, 1]} : vector<8x512xf32> to vector<8x256xf32>
    %29 = vector.extract_strided_slice %4 {offsets = [0, 220], sizes = [8, 256], strides = [1, 1]} : vector<8x512xf32> to vector<8x256xf32>
    %30 = vector.extract_strided_slice %4 {offsets = [0, 221], sizes = [8, 256], strides = [1, 1]} : vector<8x512xf32> to vector<8x256xf32>
    %31 = vector.extract_strided_slice %4 {offsets = [0, 222], sizes = [8, 256], strides = [1, 1]} : vector<8x512xf32> to vector<8x256xf32>
    %32 = tpu.concatenate %5, %6, %7, %8, %9, %10, %11, %12, %13, %14, %15, %16, %17, %18, %19, %20 in 0 : vector<8x256xf32>, vector<8x256xf32>, vector<8x256xf32>, vector<8x256xf32>, vector<8x256xf32>, vector<8x256xf32>, vector<8x256xf32>, vector<8x256xf32>, vector<8x256xf32>, vector<8x256xf32>, vector<8x256xf32>, vector<8x256xf32>, vector<8x256xf32>, vector<8x256xf32>, vector<8x256xf32>, vector<8x256xf32> -> vector<128x256xf32>
    %33 = tpu.concatenate %21, %22, %23, %24, %25, %26, %27, %28, %29, %30, %31 in 0 : vector<8x256xf32>, vector<8x256xf32>, vector<8x256xf32>, vector<8x256xf32>, vector<8x256xf32>, vector<8x256xf32>, vector<8x256xf32>, vector<8x256xf32>, vector<8x256xf32>, vector<8x256xf32>, vector<8x256xf32> -> vector<88x256xf32>
    %34 = tpu.concatenate %32, %33 in 0 : vector<128x256xf32>, vector<88x256xf32> -> vector<216x256xf32>
    %c0_5 = arith.constant 0 : index
    %c0_6 = arith.constant 0 : index
    %c0_7 = arith.constant 0 : index
    %35 = vector.load %arg4[%c0_5, %c0_6, %c0_7] : memref<1x8x216xf32, #tpu.memory_space<vmem>>, vector<1x8x216xf32>
    %36 = vector.shape_cast %35 : vector<1x8x216xf32> to vector<8x216xf32>
    %cst = arith.constant dense<0.000000e+00> : vector<8x256xf32>
    %37 = tpu.matmul %36, %34, %cst {dimension_numbers = #tpu.dot_dimension_numbers<[1], [0], [0], [1], [0, 0, 1, 1], [], []>} : vector<8x216xf32>, vector<216x256xf32>, vector<8x256xf32> -> vector<8x256xf32>
    %c0_8 = arith.constant 0 : index
    %c0_9 = arith.constant 0 : index
    %c0_10 = arith.constant 0 : index
    %38 = vector.load %arg5[%c0_8, %c0_9, %c0_10] : memref<1x8x256xf32, #tpu.memory_space<vmem>>, vector<1x8x256xf32>
    %39 = vector.shape_cast %38 : vector<1x8x256xf32> to vector<8x256xf32>
    %40 = vector.shape_cast %37 : vector<8x256xf32> to vector<1x8x256xf32>
    tpu.vector_store %arg5[%c0_8, %c0_9, %c0_10], %40 {strides = array<i32>} : memref<1x8x256xf32, #tpu.memory_space<vmem>>, vector<1x8x256xf32>,
    return
  }
  func.func @transform_0(%arg0: i32, %arg1: i32) -> (i32, i32, i32) {
    %c0_i32 = arith.constant 0 : i32
    %c0_i32_0 = arith.constant 0 : i32
    return %arg0, %c0_i32, %arg1 : i32, i32, i32
  }
  func.func @transform_1(%arg0: i32, %arg1: i32) -> (i32, i32, i32) {
    %c1_i32 = arith.constant 1 : i32
    %0 = arith.addi %arg1, %c1_i32 : i32
    %c1_i32_0 = arith.constant 1 : i32
    %1 = arith.muli %0, %c1_i32_0 : i32
    %c0_i32 = arith.constant 0 : i32
    %c0_i32_1 = arith.constant 0 : i32
    return %arg0, %c0_i32, %1 : i32, i32, i32
  }
  func.func @transform_2(%arg0: i32, %arg1: i32) -> (i32, i32, i32) {
    %c0_i32 = arith.constant 0 : i32
    %c0_i32_0 = arith.constant 0 : i32
    %c0_i32_1 = arith.constant 0 : i32
    %c0_i32_2 = arith.constant 0 : i32
    return %c0_i32, %c0_i32_0, %c0_i32_1 : i32, i32, i32
  }
  func.func @transform_3(%arg0: i32, %arg1: i32) -> (i32, i32, i32) {
    %c0_i32 = arith.constant 0 : i32
    %c0_i32_0 = arith.constant 0 : i32
    return %arg0, %c0_i32, %arg1 : i32, i32, i32
  }
}

</mosaic_0001>

<llo_original>
// kernel: tpu_custom_call.1
$region0: #{tpu_custom_call.1}
  #allocation0 [shape = 'u32[]', space=smem, size = 0x4, offset = 0x4, fixed_abs, tag = 'smem constant byte address 0x4 - core index']
  #allocation1 [shape = 'u32[144,128]{1,0:T(1,128)}', space=vmem, size = 0x12000, scoped, tag = 'internal scratch']
  %s0 = inlined_call_operand.hbm [shape: f32[2,8,800], index: 0, kind: input, shape index: {}]
  %s1 = inlined_call_operand.hbm [shape: f32[2,8,800], index: 1, kind: input, shape index: {}]
  %s2 = inlined_call_operand.hbm [shape: f32[1,8,216], index: 2, kind: input, shape index: {}]
  %s3 = inlined_call_operand.hbm [shape: f32[2,8,512], index: 3, kind: output, shape index: {}]
  %s4 = sld [smem:[#allocation0]]
  $region57: #{tpu_custom_call.1} parent=0
    _
  %s6 = ssub.s32 1, %s4
  %s7 = scalar_select 0, %s6, %s4
  $region1: #{tpu_custom_call.1} parent=0
    #allocation2 [shape = 'u8[16384]{0}', space=vmem, size = 0x4000, scoped, tag = 'input window, operand 0']
    #allocation3 [shape = 's32[2]{0}', space=sflag, size = 0x8, scoped, tag = 'scoped memory for tpu_custom_call.1']
    #allocation4 [shape = 's32[2]{0}', space=sflag, size = 0x8, scoped, tag = 'scoped memory for tpu_custom_call.1']
    #allocation5 [shape = 'u8[16384]{0}', space=vmem, size = 0x4000, scoped, tag = 'input window, operand 1']
    #allocation6 [shape = 's32[2]{0}', space=sflag, size = 0x8, scoped, tag = 'scoped memory for tpu_custom_call.1']
    #allocation7 [shape = 'u8[8192]{0}', space=vmem, size = 0x2000, scoped, tag = 'input window, operand 2, single buffered']
    #allocation8 [shape = 'u8[16384]{0}', space=vmem, size = 0x4000, scoped, tag = 'output window, operand 0']
    %8 = vsyncpa [#allocation3], 0
    %s9 = scalar_lea.sflag [#allocation3], 1
    %10 = vsyncpa %s9, 0
    %11 = vsyncpa [#allocation6], 0
    %s12 = scalar_lea.sflag [#allocation6], 1
    %13 = vsyncpa %s12, 0
    %14 = vsyncpa [#allocation4], 0
    %s15 = scalar_lea.sflag [#allocation4], 1
    %16 = vsyncpa %s15, 0
    loop: start=0, step=1, limit=6
    $region2: #{tpu_custom_call.1} parent=1 // loop_pre_header
      _
    $region3: #{tpu_custom_call.1} parent=1 // loop_header
      %s18 = sphi 0, %s22
      %p19 = scmp.ge.s32.totalorder %s18, 6
      %s25 = sphi 0, %s37
      %s26 = sphi 0, %s33
      %s27 = sphi 0, %s25
      %s28 = sphi 0, %s26
      %s29 = sphi 0, %s27
      %s30 = sphi 0, %s28
      %s42 = sphi 0, %s44
      %s45 = sphi 0, %s42
      %s46 = sphi 0, %s45
      %s62 = sphi 0, %s46
      %s72 = sphi 0, %s74
      %s75 = sphi 0, %s72
      %s76 = sphi 0, %s75
      %s92 = sphi 0, %s76
      %s96 = sphi 0, %s96
      %s98 = sphi 0, %s96
      %s99 = sphi 0, %s98
      %s113 = sphi 0, %s99
      %s121 = sphi 0, %s123
      %s124 = sphi 0, %s121
      %s125 = sphi 0, %s124
      %s141 = sphi 0, %s125
    $region4: #{tpu_custom_call.1} parent=1 // loop_header_branch
      %21 = sbr.rel (%p19) target = $region8
    $region5: #{tpu_custom_call.1} parent=1 // loop_body
      %s23 = ssub.s32 %s18, 1
      %s24 = ssub.s32 %s18, 2
      %s31 = sadd.s32 1, %s26
      %p32 = scmp.ge.s32.totalorder %s31, 2
      %s33 = scalar_select %p32, 0, %s31
      %s34 = sadd.s32 1, %s25
      %s35 = scalar_select %p32, %s34, %s25
      %p36 = scmp.ge.s32.totalorder %s35, 2
      %s37 = scalar_select %p36, 0, %s35
      %s38 = ssub.s32 %s25, %s37
      %s39 = ssub.s32 %s26, %s33
      %s40 = sor.u32 %s38, %s39
      %p41 = scmp.eq.s32.totalorder %s40, 0
      %s43 = sadd.s32 %s42, 1
      %s44 = scalar_select %p41, %s42, %s43
      %p47 = pneg %p41
      %p48 = scmp.eq.s32.totalorder %s18, 3
      %p49 = por %p47, %p48
      %p50 = scmp.ne.s32.totalorder %s42, %s45
      %p51 = scmp.eq.s32.totalorder %s18, 0
      %p52 = por %p50, %p51
      %p53 = scmp.ne.s32.totalorder %s42, %s45
      %p54 = scmp.eq.s32.totalorder %s23, 3
      %p55 = por %p53, %p54
      %p56 = scmp.ne.s32.totalorder %s45, %s46
      %p57 = scmp.eq.s32.totalorder %s23, 0
      %p58 = por %p56, %p57
      %p59 = scmp.ne.s32.totalorder %s45, %s46
      %p60 = scmp.eq.s32.totalorder %s24, 3
      %p61 = por %p59, %p60
      %p63 = scmp.ne.s32.totalorder %s46, %s62
      %p64 = scmp.eq.s32.totalorder %s24, 0
      %p65 = por %p63, %p64
      %s66 = sadd.s32 %s26, 1
      %s67 = sadd.s32 %s33, 1
      %s68 = ssub.s32 %s25, %s37
      %s69 = ssub.s32 %s66, %s67
      %s70 = sor.u32 %s68, %s69
      %p71 = scmp.eq.s32.totalorder %s70, 0
      %s73 = sadd.s32 %s72, 1
      %s74 = scalar_select %p71, %s72, %s73
      %p77 = pneg %p71
      %p78 = scmp.eq.s32.totalorder %s18, 3
      %p79 = por %p77, %p78
      %p80 = scmp.ne.s32.totalorder %s72, %s75
      %p81 = scmp.eq.s32.totalorder %s18, 0
      %p82 = por %p80, %p81
      %p83 = scmp.ne.s32.totalorder %s72, %s75
      %p84 = scmp.eq.s32.totalorder %s23, 3
      %p85 = por %p83, %p84
      %p86 = scmp.ne.s32.totalorder %s75, %s76
      %p87 = scmp.eq.s32.totalorder %s23, 0
      %p88 = por %p86, %p87
      %p89 = scmp.ne.s32.totalorder %s75, %s76
      %p90 = scmp.eq.s32.totalorder %s24, 3
      %p91 = por %p89, %p90
      %p93 = scmp.ne.s32.totalorder %s76, %s92
      %p94 = scmp.eq.s32.totalorder %s24, 0
      %p95 = por %p93, %p94
      %s97 = sadd.s32 %s96, 1
      %p100 = scmp.eq.s32.totalorder %s18, 3
      %p101 = scmp.ne.s32.totalorder %s96, %s98
      %p102 = scmp.eq.s32.totalorder %s18, 0
      %p103 = por %p101, %p102
      %p104 = scmp.ne.s32.totalorder %s96, %s98
      %p105 = scmp.eq.s32.totalorder %s23, 3
      %p106 = por %p104, %p105
      %p107 = scmp.ne.s32.totalorder %s98, %s99
      %p108 = scmp.eq.s32.totalorder %s23, 0
      %p109 = por %p107, %p108
      %p110 = scmp.ne.s32.totalorder %s98, %s99
      %p111 = scmp.eq.s32.totalorder %s24, 3
      %p112 = por %p110, %p111
      %p114 = scmp.ne.s32.totalorder %s99, %s113
      %p115 = scmp.eq.s32.totalorder %s24, 0
      %p116 = por %p114, %p115
      %s117 = ssub.s32 %s25, %s37
      %s118 = ssub.s32 %s26, %s33
      %s119 = sor.u32 %s117, %s118
      %p120 = scmp.eq.s32.totalorder %s119, 0
      %s122 = sadd.s32 %s121, 1
      %s123 = scalar_select %p120, %s121, %s122
      %p126 = pneg %p120
      %p127 = scmp.eq.s32.totalorder %s18, 3
      %p128 = por %p126, %p127
      %p129 = scmp.ne.s32.totalorder %s121, %s124
      %p130 = scmp.eq.s32.totalorder %s18, 0
      %p131 = por %p129, %p130
      %p132 = scmp.ne.s32.totalorder %s121, %s124
      %p133 = scmp.eq.s32.totalorder %s23, 3
      %p134 = por %p132, %p133
      %p135 = scmp.ne.s32.totalorder %s124, %s125
      %p136 = scmp.eq.s32.totalorder %s23, 0
      %p137 = por %p135, %p136
      %p138 = scmp.ne.s32.totalorder %s124, %s125
      %p139 = scmp.eq.s32.totalorder %s24, 3
      %p140 = por %p138, %p139
      %p142 = scmp.ne.s32.totalorder %s125, %s141
      %p143 = scmp.eq.s32.totalorder %s24, 0
      %p144 = por %p142, %p143
      %p145 = scmp.le.s32.totalorder 1, %s18
      %p146 = scmp.lt.s32.totalorder %s18, 5
      %p147 = pnand %p145, %p146
      %p148 = pneg %p147
      // Predicated region
      $region9: #{tpu_custom_call.1} parent=5 // pred_check
        _
      $region10: #{tpu_custom_call.1} parent=5 // pred_check_branch
        %150 = sbr.rel (%p147) target = $region12
      $region11: #{tpu_custom_call.1} parent=5 // pred_region
        %s151 = ssub.s32 %s18, 1
        // Predicated region
        $region13: #{tpu_custom_call.1} parent=11 // pred_check
          %p152 = pneg %p109
        $region14: #{tpu_custom_call.1} parent=11 // pred_check_branch
          %154 = sbr.rel (%p152) target = $region16
        $region15: #{tpu_custom_call.1} parent=11 // pred_region
          %s156 = ssub.s32 256, 256
          %157 = vsyncadd [#allocation6], %s156
          %s159 = sshll.u32 [#allocation7], 4
          %s160 = int_to_ptr.vmem [resolvable:$true] %s159
          %162 = dma.hbm_to_vmem [thread:$0]  %s2, 256, %s160, [#allocation6]
        $region16: #{tpu_custom_call.1} parent=11 // pred_fallthru
          _
      $region12: #{tpu_custom_call.1} parent=5 // pred_fallthru
        _
      %p163 = scmp.lt.s32.totalorder %s18, 4
      // Predicated region
      $region17: #{tpu_custom_call.1} parent=5 // pred_check
        %p164 = pneg %p163
      $region18: #{tpu_custom_call.1} parent=5 // pred_check_branch
        %166 = sbr.rel (%p164) target = $region20
      $region19: #{tpu_custom_call.1} parent=5 // pred_region
        // Predicated region
        $region21: #{tpu_custom_call.1} parent=19 // pred_check
          %p167 = pneg %p52
        $region22: #{tpu_custom_call.1} parent=19 // pred_check_branch
          %169 = sbr.rel (%p167) target = $region24
        $region23: #{tpu_custom_call.1} parent=19 // pred_region
          %s170 = sand.u32 %s42, 1
          %s171 = scalar_lea.sflag [#allocation3], %s170
          %s172 = sand.u32 %s42, 1
          %s173 = smul.addr %s172, 16
          %s174 = scalar_lea.vmem [#allocation2], %s173
          %s175 = smul.u32 2, %s26
          %s176 = ssub.s32 7, %s175
          %p177 = scmp.lt.s32.totalorder %s176, 2
          %s178 = scalar_select %p177, %s176, 2
          %s179 = smul.u32 128, %s178
          %s181 = ssub.s32 256, %s179
          %182 = vsyncadd %s171, %s181
          %p183 = scmp.ne.s32.totalorder 0, %s179
          %s184 = smul.addr %s25, 7
          %s185 = sadd.s32 %s175, %s184
          %s186 = smul.addr %s185, 128
          %s187 = scalar_lea.hbm %s0, %s186
          %s188 = smul.u32 %s178, 8
          %s189 = sshll.u32 %s188, 4
          %s190 = sshll.u32 %s174, 4
          %s191 = int_to_ptr.vmem [resolvable:$true] %s190
          %193 = dma.hbm_to_vmem [thread:$0]  (%p183), %s187, %s189, %s191, %s171
        $region24: #{tpu_custom_call.1} parent=19 // pred_fallthru
          _
        // Predicated region
        $region25: #{tpu_custom_call.1} parent=19 // pred_check
          %p194 = pneg %p82
        $region26: #{tpu_custom_call.1} parent=19 // pred_check_branch
          %196 = sbr.rel (%p194) target = $region28
        $region27: #{tpu_custom_call.1} parent=19 // pred_region
          %s197 = sand.u32 %s18, 1
          %s198 = scalar_lea.sflag [#allocation6], %s197
          %s199 = sand.u32 %s72, 1
          %s200 = smul.addr %s199, 16
          %s201 = scalar_lea.vmem [#allocation5], %s200
          %s202 = sadd.s32 %s26, 1
          %s203 = smul.u32 2, %s202
          %s204 = ssub.s32 7, %s203
          %p205 = scmp.lt.s32.totalorder %s204, 2
          %s206 = scalar_select %p205, %s204, 2
          %s207 = smul.u32 128, %s206
          %s209 = ssub.s32 256, %s207
          %210 = vsyncadd %s198, %s209
          %p211 = scmp.ne.s32.totalorder 0, %s207
          %s212 = smul.addr %s25, 7
          %s213 = sadd.s32 %s203, %s212
          %s214 = smul.addr %s213, 128
          %s215 = scalar_lea.hbm %s1, %s214
          %s216 = smul.u32 %s206, 8
          %s217 = sshll.u32 %s216, 4
          %s218 = sshll.u32 %s201, 4
          %s219 = int_to_ptr.vmem [resolvable:$true] %s218
          %221 = dma.hbm_to_vmem [thread:$0]  (%p211), %s215, %s217, %s219, %s198
        $region28: #{tpu_custom_call.1} parent=19 // pred_fallthru
          _
      $region20: #{tpu_custom_call.1} parent=5 // pred_fallthru
        _
      %p222 = scmp.le.s32.totalorder 1, %s18
      %p223 = scmp.lt.s32.totalorder %s18, 5
      %p224 = pnand %p222, %p223
      %p225 = pneg %p224
      // Predicated region
      $region29: #{tpu_custom_call.1} parent=5 // pred_check
        _
      $region30: #{tpu_custom_call.1} parent=5 // pred_check_branch
        %227 = sbr.rel (%p224) target = $region32
      $region31: #{tpu_custom_call.1} parent=5 // pred_region
        %s228 = ssub.s32 %s18, 1
        %s229 = sand.u32 %s45, 1
        %s230 = scalar_lea.sflag [#allocation3], %s229
        %s231 = sand.u32 %s45, 1
        %s232 = smul.addr %s231, 16
        %s233 = scalar_lea.vmem [#allocation2], %s232
        // Predicated region
        $region33: #{tpu_custom_call.1} parent=31 // pred_check
          %p234 = pneg %p58
        $region34: #{tpu_custom_call.1} parent=31 // pred_check_branch
          %236 = sbr.rel (%p234) target = $region36
        $region35: #{tpu_custom_call.1} parent=31 // pred_region
          %237 = dma.done %s230, 256
        $region36: #{tpu_custom_call.1} parent=31 // pred_fallthru
          _
        %s238 = sand.u32 %s23, 1
        %s239 = scalar_lea.sflag [#allocation6], %s238
        %s240 = sand.u32 %s75, 1
        %s241 = smul.addr %s240, 16
        %s242 = scalar_lea.vmem [#allocation5], %s241
        // Predicated region
        $region37: #{tpu_custom_call.1} parent=31 // pred_check
          %p243 = pneg %p88
        $region38: #{tpu_custom_call.1} parent=31 // pred_check_branch
          %245 = sbr.rel (%p243) target = $region40
        $region39: #{tpu_custom_call.1} parent=31 // pred_region
          %246 = dma.done %s239, 256
        $region40: #{tpu_custom_call.1} parent=31 // pred_fallthru
          _
        // Predicated region
        $region41: #{tpu_custom_call.1} parent=31 // pred_check
          %p247 = pneg %p109
        $region42: #{tpu_custom_call.1} parent=31 // pred_check_branch
          %249 = sbr.rel (%p247) target = $region44
        $region43: #{tpu_custom_call.1} parent=31 // pred_region
          %250 = dma.done [#allocation6], 256
        $region44: #{tpu_custom_call.1} parent=31 // pred_fallthru
          _
        %s251 = sand.u32 %s45, 1
        %s252 = scalar_lea.sflag [#allocation3], %s251
        %s253 = sand.u32 %s45, 1
        %s254 = smul.addr %s253, 16
        %s255 = scalar_lea.vmem [#allocation2], %s254
        %p256 = pneg %p58
        %p257 = pneg %p55
        %s258 = sand.u32 %s23, 1
        %s259 = scalar_lea.sflag [#allocation6], %s258
        %s260 = sand.u32 %s75, 1
        %s261 = smul.addr %s260, 16
        %s262 = scalar_lea.vmem [#allocation5], %s261
        %p263 = pneg %p88
        %p264 = pneg %p85
        %p265 = pneg %p109
        %p266 = pneg %p106
        %p267 = pneg %p137
        %p268 = pneg %p134
        %s269 = sand.u32 %s124, 1
        %s270 = scalar_lea.sflag [#allocation4], %s269
        %s271 = sand.u32 %s124, 1
        %s272 = smul.addr %s271, 16
        %s273 = scalar_lea.vmem [#allocation8], %s272
        %s274 = smul.u32 2, %s28
        %s275 = ssub.s32 7, %s274
        %p276 = scmp.lt.s32.totalorder %s275, 2
        %s277 = scalar_select %p276, %s275, 2
        %s278 = smul.u32 128, %s277
        %s279 = sadd.s32 %s28, 1
        %s280 = smul.u32 2, %s279
        %s281 = ssub.s32 7, %s280
        %p282 = scmp.lt.s32.totalorder %s281, 2
        %s283 = scalar_select %p282, %s281, 2
        %s284 = smul.u32 128, %s283
        %s285 = smul.u32 2, %s28
        %v286 = vld [vmem:[%s233] sm:$0xff]
        %v287 = vld [vmem:[%s233 + $0x8] sm:$0xff]
        %v288 = vld [vmem:[%s242] sm:$0xff]
        %v289 = vld [vmem:[%s242 + $0x8] sm:$0xff]
        %293 = vrot.lane.b32.xlu0 %v286, 127
        %v294 = vpop.permute.xlu0 %293
        %295 = vrot.lane.b32.xlu0 %v287, 127
        %v296 = vpop.permute.xlu0 %295
        %297 = vrot.lane.b32.xlu0 %v288, 127
        %v298 = vpop.permute.xlu0 %297
        %vm299 = vcmask 1039360
        %v300 = vsel %vm299, %v294, %v296
        %v301 = vsel %vm299, %v296, %v298
        %304 = vrot.lane.b32.xlu0 %v286, 126
        %v305 = vpop.permute.xlu0 %304
        %306 = vrot.lane.b32.xlu0 %v287, 126
        %v307 = vpop.permute.xlu0 %306
        %308 = vrot.lane.b32.xlu0 %v288, 126
        %v309 = vpop.permute.xlu0 %308
        %vm310 = vcmask 1031168
        %v311 = vsel %vm310, %v305, %v307
        %v312 = vsel %vm310, %v307, %v309
        %315 = vrot.lane.b32.xlu0 %v286, 118
        %v316 = vpop.permute.xlu0 %315
        %317 = vrot.lane.b32.xlu0 %v287, 118
        %v318 = vpop.permute.xlu0 %317
        %319 = vrot.lane.b32.xlu0 %v288, 118
        %v320 = vpop.permute.xlu0 %319
        %vm321 = vcmask 965632
        %v322 = vsel %vm321, %v316, %v318
        %v323 = vsel %vm321, %v318, %v320
        %326 = vrot.lane.b32.xlu0 %v286, 117
        %v327 = vpop.permute.xlu0 %326
        %328 = vrot.lane.b32.xlu0 %v287, 117
        %v329 = vpop.permute.xlu0 %328
        %330 = vrot.lane.b32.xlu0 %v288, 117
        %v331 = vpop.permute.xlu0 %330
        %vm332 = vcmask 957440
        %v333 = vsel %vm332, %v327, %v329
        %v334 = vsel %vm332, %v329, %v331
        %337 = vrot.lane.b32.xlu0 %v286, 116
        %v338 = vpop.permute.xlu0 %337
        %339 = vrot.lane.b32.xlu0 %v287, 116
        %v340 = vpop.permute.xlu0 %339
        %341 = vrot.lane.b32.xlu0 %v288, 116
        %v342 = vpop.permute.xlu0 %341
        %vm343 = vcmask 949248
        %v344 = vsel %vm343, %v338, %v340
        %v345 = vsel %vm343, %v340, %v342
        %348 = vrot.lane.b32.xlu0 %v286, 108
        %v349 = vpop.permute.xlu0 %348
        %350 = vrot.lane.b32.xlu0 %v287, 108
        %v351 = vpop.permute.xlu0 %350
        %352 = vrot.lane.b32.xlu0 %v288, 108
        %v353 = vpop.permute.xlu0 %352
        %vm354 = vcmask 883712
        %v355 = vsel %vm354, %v349, %v351
        %v356 = vsel %vm354, %v351, %v353
        %359 = vrot.lane.b32.xlu0 %v286, 107
        %v360 = vpop.permute.xlu0 %359
        %361 = vrot.lane.b32.xlu0 %v287, 107
        %v362 = vpop.permute.xlu0 %361
        %363 = vrot.lane.b32.xlu0 %v288, 107
        %v364 = vpop.permute.xlu0 %363
        %vm365 = vcmask 875520
        %v366 = vsel %vm365, %v360, %v362
        %v367 = vsel %vm365, %v362, %v364
        %370 = vrot.lane.b32.xlu0 %v286, 106
        %v371 = vpop.permute.xlu0 %370
        %372 = vrot.lane.b32.xlu0 %v287, 106
        %v373 = vpop.permute.xlu0 %372
        %374 = vrot.lane.b32.xlu0 %v288, 106
        %v375 = vpop.permute.xlu0 %374
        %vm376 = vcmask 867328
        %v377 = vsel %vm376, %v371, %v373
        %v378 = vsel %vm376, %v373, %v375
        %381 = vrot.lane.b32.xlu0 %v286, 28
        %v382 = vpop.permute.xlu0 %381
        %383 = vrot.lane.b32.xlu0 %v287, 28
        %v384 = vpop.permute.xlu0 %383
        %385 = vrot.lane.b32.xlu0 %v288, 28
        %v386 = vpop.permute.xlu0 %385
        %vm387 = vcmask 228352
        %v388 = vsel %vm387, %v382, %v384
        %v389 = vsel %vm387, %v384, %v386
        %392 = vrot.lane.b32.xlu0 %v286, 27
        %v393 = vpop.permute.xlu0 %392
        %394 = vrot.lane.b32.xlu0 %v287, 27
        %v395 = vpop.permute.xlu0 %394
        %396 = vrot.lane.b32.xlu0 %v288, 27
        %v397 = vpop.permute.xlu0 %396
        %vm398 = vcmask 220160
        %v399 = vsel %vm398, %v393, %v395
        %v400 = vsel %vm398, %v395, %v397
        %403 = vrot.lane.b32.xlu0 %v286, 26
        %v404 = vpop.permute.xlu0 %403
        %405 = vrot.lane.b32.xlu0 %v287, 26
        %v406 = vpop.permute.xlu0 %405
        %407 = vrot.lane.b32.xlu0 %v288, 26
        %v408 = vpop.permute.xlu0 %407
        %vm409 = vcmask 211968
        %v410 = vsel %vm409, %v404, %v406
        %v411 = vsel %vm409, %v406, %v408
        %414 = vrot.lane.b32.xlu0 %v286, 18
        %v415 = vpop.permute.xlu0 %414
        %416 = vrot.lane.b32.xlu0 %v287, 18
        %v417 = vpop.permute.xlu0 %416
        %418 = vrot.lane.b32.xlu0 %v288, 18
        %v419 = vpop.permute.xlu0 %418
        %vm420 = vcmask 146432
        %v421 = vsel %vm420, %v415, %v417
        %v422 = vsel %vm420, %v417, %v419
        %425 = vrot.lane.b32.xlu0 %v286, 17
        %v426 = vpop.permute.xlu0 %425
        %427 = vrot.lane.b32.xlu0 %v287, 17
        %v428 = vpop.permute.xlu0 %427
        %429 = vrot.lane.b32.xlu0 %v288, 17
        %v430 = vpop.permute.xlu0 %429
        %vm431 = vcmask 138240
        %v432 = vsel %vm431, %v426, %v428
        %v433 = vsel %vm431, %v428, %v430
        %436 = vrot.lane.b32.xlu0 %v286, 16
        %v437 = vpop.permute.xlu0 %436
        %438 = vrot.lane.b32.xlu0 %v287, 16
        %v439 = vpop.permute.xlu0 %438
        %440 = vrot.lane.b32.xlu0 %v288, 16
        %v441 = vpop.permute.xlu0 %440
        %vm442 = vcmask 130048
        %v443 = vsel %vm442, %v437, %v439
        %v444 = vsel %vm442, %v439, %v441
        %447 = vrot.lane.b32.xlu0 %v286, 8
        %v448 = vpop.permute.xlu0 %447
        %449 = vrot.lane.b32.xlu0 %v287, 8
        %v450 = vpop.permute.xlu0 %449
        %451 = vrot.lane.b32.xlu0 %v288, 8
        %v452 = vpop.permute.xlu0 %451
        %vm453 = vcmask 64512
        %v454 = vsel %vm453, %v448, %v450
        %v455 = vsel %vm453, %v450, %v452
        %459 = vrot.lane.b32.xlu0 %v287, 49
        %v460 = vpop.permute.xlu0 %459
        %461 = vrot.lane.b32.xlu0 %v288, 49
        %v462 = vpop.permute.xlu0 %461
        %463 = vrot.lane.b32.xlu0 %v289, 49
        %v464 = vpop.permute.xlu0 %463
        %vm465 = vcmask 400384
        %v466 = vsel %vm465, %v460, %v462
        %v467 = vsel %vm465, %v462, %v464
        %468 = vrot.lane.b32.xlu0 %v287, 48
        %v469 = vpop.permute.xlu0 %468
        %470 = vrot.lane.b32.xlu0 %v288, 48
        %v471 = vpop.permute.xlu0 %470
        %472 = vrot.lane.b32.xlu0 %v289, 48
        %v473 = vpop.permute.xlu0 %472
        %vm474 = vcmask 392192
        %v475 = vsel %vm474, %v469, %v471
        %v476 = vsel %vm474, %v471, %v473
        %477 = vrot.lane.b32.xlu0 %v287, 47
        %v478 = vpop.permute.xlu0 %477
        %479 = vrot.lane.b32.xlu0 %v288, 47
        %v480 = vpop.permute.xlu0 %479
        %481 = vrot.lane.b32.xlu0 %v289, 47
        %v482 = vpop.permute.xlu0 %481
        %vm483 = vcmask 384000
        %v484 = vsel %vm483, %v478, %v480
        %v485 = vsel %vm483, %v480, %v482
        %486 = vrot.lane.b32.xlu0 %v287, 39
        %v487 = vpop.permute.xlu0 %486
        %488 = vrot.lane.b32.xlu0 %v288, 39
        %v489 = vpop.permute.xlu0 %488
        %490 = vrot.lane.b32.xlu0 %v289, 39
        %v491 = vpop.permute.xlu0 %490
        %vm492 = vcmask 318464
        %v493 = vsel %vm492, %v487, %v489
        %v494 = vsel %vm492, %v489, %v491
        %495 = vrot.lane.b32.xlu0 %v287, 38
        %v496 = vpop.permute.xlu0 %495
        %497 = vrot.lane.b32.xlu0 %v288, 38
        %v498 = vpop.permute.xlu0 %497
        %499 = vrot.lane.b32.xlu0 %v289, 38
        %v500 = vpop.permute.xlu0 %499
        %vm501 = vcmask 310272
        %v502 = vsel %vm501, %v496, %v498
        %v503 = vsel %vm501, %v498, %v500
        %504 = vrot.lane.b32.xlu0 %v287, 37
        %v505 = vpop.permute.xlu0 %504
        %506 = vrot.lane.b32.xlu0 %v288, 37
        %v507 = vpop.permute.xlu0 %506
        %508 = vrot.lane.b32.xlu0 %v289, 37
        %v509 = vpop.permute.xlu0 %508
        %vm510 = vcmask 302080
        %v511 = vsel %vm510, %v505, %v507
        %v512 = vsel %vm510, %v507, %v509
        %513 = vrot.lane.b32.xlu0 %v287, 29
        %v514 = vpop.permute.xlu0 %513
        %515 = vrot.lane.b32.xlu0 %v288, 29
        %v516 = vpop.permute.xlu0 %515
        %517 = vrot.lane.b32.xlu0 %v289, 29
        %v518 = vpop.permute.xlu0 %517
        %vm519 = vcmask 236544
        %v520 = vsel %vm519, %v514, %v516
        %v521 = vsel %vm519, %v516, %v518
        %522 = vrot.lane.b32.xlu0 %v289, 28
        %v523 = vpop.permute.xlu0 %522
        %v524 = vsel %vm387, %v386, %v523
        %525 = vrot.lane.b32.xlu0 %v289, 27
        %v526 = vpop.permute.xlu0 %525
        %v527 = vsel %vm398, %v397, %v526
        %528 = vrot.lane.b32.xlu0 %v286, 7
        %v529 = vpop.permute.xlu0 %528
        %530 = vrot.lane.b32.xlu0 %v287, 7
        %v531 = vpop.permute.xlu0 %530
        %532 = vrot.lane.b32.xlu0 %v288, 7
        %v533 = vpop.permute.xlu0 %532
        %534 = vrot.lane.b32.xlu0 %v300, 7
        %v535 = vpop.permute.xlu0 %534
        %536 = vrot.lane.b32.xlu0 %v301, 7
        %v537 = vpop.permute.xlu0 %536
        %538 = vrot.lane.b32.xlu0 %v298, 7
        %v539 = vpop.permute.xlu0 %538
        %540 = vrot.lane.b32.xlu0 %v460, 7
        %v541 = vpop.permute.xlu0 %540
        %542 = vrot.lane.b32.xlu0 %v466, 7
        %v543 = vpop.permute.xlu0 %542
        %544 = vrot.lane.b32.xlu0 %v467, 7
        %v545 = vpop.permute.xlu0 %544
        %546 = vrot.lane.b32.xlu0 %v469, 7
        %v547 = vpop.permute.xlu0 %546
        %548 = vrot.lane.b32.xlu0 %v475, 7
        %v549 = vpop.permute.xlu0 %548
        %550 = vrot.lane.b32.xlu0 %v476, 7
        %v551 = vpop.permute.xlu0 %550
        %552 = vrot.lane.b32.xlu0 %v478, 7
        %v553 = vpop.permute.xlu0 %552
        %554 = vrot.lane.b32.xlu0 %v484, 7
        %v555 = vpop.permute.xlu0 %554
        %556 = vrot.lane.b32.xlu0 %v485, 7
        %v557 = vpop.permute.xlu0 %556
        %558 = vrot.lane.b32.xlu0 %v487, 7
        %v559 = vpop.permute.xlu0 %558
        %560 = vrot.lane.b32.xlu0 %v493, 7
        %v561 = vpop.permute.xlu0 %560
        %562 = vrot.lane.b32.xlu0 %v494, 7
        %v563 = vpop.permute.xlu0 %562
        %564 = vrot.lane.b32.xlu0 %v496, 7
        %v565 = vpop.permute.xlu0 %564
        %566 = vrot.lane.b32.xlu0 %v502, 7
        %v567 = vpop.permute.xlu0 %566
        %568 = vrot.lane.b32.xlu0 %v503, 7
        %v569 = vpop.permute.xlu0 %568
        %570 = vrot.lane.b32.xlu0 %v505, 7
        %v571 = vpop.permute.xlu0 %570
        %572 = vrot.lane.b32.xlu0 %v511, 7
        %v573 = vpop.permute.xlu0 %572
        %574 = vrot.lane.b32.xlu0 %v512, 7
        %v575 = vpop.permute.xlu0 %574
        %576 = vrot.lane.b32.xlu0 %v514, 7
        %v577 = vpop.permute.xlu0 %576
        %578 = vrot.lane.b32.xlu0 %v520, 7
        %v579 = vpop.permute.xlu0 %578
        %580 = vrot.lane.b32.xlu0 %v521, 7
        %v581 = vpop.permute.xlu0 %580
        %582 = vrot.lane.b32.xlu0 %v384, 7
        %v583 = vpop.permute.xlu0 %582
        %584 = vrot.lane.b32.xlu0 %v389, 7
        %v585 = vpop.permute.xlu0 %584
        %586 = vrot.lane.b32.xlu0 %v524, 7
        %v587 = vpop.permute.xlu0 %586
        %588 = vrot.lane.b32.xlu0 %v395, 7
        %v589 = vpop.permute.xlu0 %588
        %590 = vrot.lane.b32.xlu0 %v400, 7
        %v591 = vpop.permute.xlu0 %590
        %592 = vrot.lane.b32.xlu0 %v527, 7
        %v593 = vpop.permute.xlu0 %592
        %vm594 = vcmask 56320
        %v595 = vsel %vm594, %v529, %v531
        %v596 = vsel %vm594, %v531, %v533
        %v597 = vsel %vm594, %v535, %v537
        %v598 = vsel %vm594, %v537, %v539
        %v599 = vsel %vm594, %v541, %v543
        %v600 = vsel %vm594, %v543, %v545
        %v601 = vsel %vm594, %v547, %v549
        %v602 = vsel %vm594, %v549, %v551
        %v603 = vsel %vm594, %v553, %v555
        %v604 = vsel %vm594, %v555, %v557
        %v605 = vsel %vm594, %v559, %v561
        %v606 = vsel %vm594, %v561, %v563
        %v607 = vsel %vm594, %v565, %v567
        %v608 = vsel %vm594, %v567, %v569
        %v609 = vsel %vm594, %v571, %v573
        %v610 = vsel %vm594, %v573, %v575
        %v611 = vsel %vm594, %v577, %v579
        %v612 = vsel %vm594, %v579, %v581
        %v613 = vsel %vm594, %v583, %v585
        %v614 = vsel %vm594, %v585, %v587
        %v615 = vsel %vm594, %v589, %v591
        %v616 = vsel %vm594, %v591, %v593
        %v639 = vld [vmem:[#allocation7] sm:$0xff]
        %v640 = vld [vmem:[#allocation7 + $0x8] sm:$0xff]
        %vm641 = vcmask 719872
        %v643 = vsel %vm641, %v640, 0
        %645 = vmatprep.subr.mxu0 %v287
        %646 = vmatpush1.msra.mxu0 %v286
        %647 = vmatprep.subr.mxu0 %v301
        %648 = vmatpush1.msra.mxu0 %v300
        %649 = vmatprep.subr.mxu0 %v312
        %650 = vmatpush1.msra.mxu0 %v311
        %651 = vmatprep.subr.mxu0 %v323
        %652 = vmatpush1.msra.mxu0 %v322
        %653 = vmatprep.subr.mxu0 %v334
        %654 = vmatpush1.msra.mxu0 %v333
        %655 = vmatprep.subr.mxu0 %v345
        %656 = vmatpush1.msra.mxu0 %v344
        %657 = vmatprep.subr.mxu0 %v356
        %658 = vmatpush1.msra.mxu0 %v355
        %659 = vmatprep.subr.mxu0 %v367
        %660 = vmatpush1.msra.mxu0 %v366
        %661 = vmatprep.subr.mxu0 %v378
        %662 = vmatpush1.msra.mxu0 %v377
        %663 = vmatprep.subr.mxu0 %v389
        %664 = vmatpush1.msra.mxu0 %v388
        %665 = vmatprep.subr.mxu0 %v400
        %666 = vmatpush1.msra.mxu0 %v399
        %667 = vmatprep.subr.mxu0 %v411
        %668 = vmatpush1.msra.mxu0 %v410
        %669 = vmatprep.subr.mxu0 %v422
        %670 = vmatpush1.msra.mxu0 %v421
        %671 = vmatprep.subr.mxu0 %v433
        %672 = vmatpush1.msra.mxu0 %v432
        %673 = vmatprep.subr.mxu0 %v444
        %674 = vmatpush1.msra.mxu0 %v443
        %675 = vmatprep.subr.mxu0 %v455
        %676 = vmatpush1.msra.mxu0 %v454
        %677 = vmatprep.subr.mxu0 %v596
        %678 = vmatpush1.msra.mxu0 %v595
        %679 = vmatprep.subr.mxu0 %v598
        %680 = vmatpush1.msra.mxu0 %v597
        %681 = vmatprep.subr.mxu0 %v600
        %682 = vmatpush1.msra.mxu0 %v599
        %683 = vmatprep.subr.mxu0 %v602
        %684 = vmatpush1.msra.mxu0 %v601
        %685 = vmatprep.subr.mxu0 %v604
        %686 = vmatpush1.msra.mxu0 %v603
        %687 = vmatprep.subr.mxu0 %v606
        %688 = vmatpush1.msra.mxu0 %v605
        %689 = vmatprep.subr.mxu0 %v608
        %690 = vmatpush1.msra.mxu0 %v607
        %691 = vmatprep.subr.mxu0 %v610
        %692 = vmatpush1.msra.mxu0 %v609
        %693 = vmatprep.subr.mxu0 %v612
        %694 = vmatpush1.msra.mxu0 %v611
        %695 = vmatprep.subr.mxu0 %v614
        %696 = vmatpush1.msra.mxu0 %v613
        %697 = vmatprep.subr.mxu0 %v616
        %698 = vmatpush1.msra.mxu0 %v615
        %699 = vmatprep.subr.mxu0 0.0
        %700 = vmatpush1.msra.mxu0 0.0
        %701 = vmatprep.subr.mxu0 0.0
        %702 = vmatpush1.msra.mxu0 0.0
        %703 = vmatprep.subr.mxu0 0.0
        %704 = vmatpush1.msra.mxu0 0.0
        %705 = vmatprep.subr.mxu0 0.0
        %706 = vmatpush1.msra.mxu0 0.0
        %707 = vmatprep.subr.mxu0 0.0
        %708 = vmatpush1.msra.mxu0 0.0
        %709 = vmatprep.mubr.f32.mxu0 %v643
        %710 = vmatmul.mubr.f32.gmra.mrb[0].mxu0 %v639
        %v711 = vpop.f32.mrb[0].mxu0
        %v712 = vadd.f32 0.0, %v711
        %v713 = vpop.f32.mrb[0].mxu0
        %v714 = vadd.f32 0.0, %v713
        %715 = vdwg.mxu0
        %716 = vst [vmem:[%s273] sm:$0xff] %v712
        %717 = vst [vmem:[%s273 + $0x8] sm:$0xff] %v714
        %s718 = sand.u32 %s124, 1
        %s719 = scalar_lea.sflag [#allocation4], %s718
        %s720 = sand.u32 %s124, 1
        %s721 = smul.addr %s720, 16
        %s722 = scalar_lea.vmem [#allocation8], %s721
        // Predicated region
        $region45: #{tpu_custom_call.1} parent=31 // pred_check
          %p723 = pneg %p134
        $region46: #{tpu_custom_call.1} parent=31 // pred_check_branch
          %725 = sbr.rel (%p723) target = $region48
        $region47: #{tpu_custom_call.1} parent=31 // pred_region
          %s726 = smul.u32 2, %s28
          %s728 = ssub.s32 256, 256
          %729 = vsyncadd %s719, %s728
          %s730 = smul.addr %s27, 4
          %s731 = sadd.s32 %s726, %s730
          %s732 = smul.addr %s731, 128
          %s733 = scalar_lea.hbm %s3, %s732
          %s735 = sshll.u32 %s722, 4
          %s736 = int_to_ptr.vmem [resolvable:$true] %s735
          %738 = dma.vmem_to_hbm [thread:$0]  %s736, 256, %s733, %s719
        $region48: #{tpu_custom_call.1} parent=31 // pred_fallthru
          _
      $region32: #{tpu_custom_call.1} parent=5 // pred_fallthru
        _
      %p739 = scmp.le.s32.totalorder 2, %s18
      // Predicated region
      $region49: #{tpu_custom_call.1} parent=5 // pred_check
        %p740 = pneg %p739
      $region50: #{tpu_custom_call.1} parent=5 // pred_check_branch
        %742 = sbr.rel (%p740) target = $region52
      $region51: #{tpu_custom_call.1} parent=5 // pred_region
        %s743 = ssub.s32 %s18, 2
        // Predicated region
        $region53: #{tpu_custom_call.1} parent=51 // pred_check
          %p744 = pneg %p140
        $region54: #{tpu_custom_call.1} parent=51 // pred_check_branch
          %746 = sbr.rel (%p744) target = $region56
        $region55: #{tpu_custom_call.1} parent=51 // pred_region
          %s747 = sand.u32 %s125, 1
          %s748 = scalar_lea.sflag [#allocation4], %s747
          %s749 = sand.u32 %s125, 1
          %s750 = smul.addr %s749, 16
          %s751 = scalar_lea.vmem [#allocation8], %s750
          %752 = dma.done %s748, 256
        $region56: #{tpu_custom_call.1} parent=51 // pred_fallthru
          _
      $region52: #{tpu_custom_call.1} parent=5 // pred_fallthru
        _
    $region6: #{tpu_custom_call.1} parent=1 // loop_footer
      %s22 = sadd.s32 1, %s18
    $region7: #{tpu_custom_call.1} parent=1 // loop_footer_branch
      %17 = sbr.rel target = $region3
    $region8: #{tpu_custom_call.1} parent=1 // loop_exit
      _
    %753 = vsyncpa [#allocation3], 1
    %s754 = scalar_lea.sflag [#allocation3], 1
    %755 = vsyncpa %s754, 1
    %756 = vsyncpa [#allocation6], 1
    %s757 = scalar_lea.sflag [#allocation6], 1
    %758 = vsyncpa %s757, 1
    %759 = vsyncpa [#allocation4], 1
    %s760 = scalar_lea.sflag [#allocation4], 1
    %761 = vsyncpa %s760, 1

</llo_original>
